<compile_context>
chip_gen: v7x
topology: tpu7x:2x2x1
jax: 0.10.0
libtpu: 0.0.40
codegen_flags: <defaults>
</compile_context>

<pallas_src>
import math
from functools import partial

import jax
import jax.numpy as jnp
from jax.experimental import pallas as pl
from jax.experimental.pallas import tpu as pltpu

LANE = 128
SMOOTH = 1e-5


def _round_up(n, m):
    return ((n + m - 1) // m) * m


def _cdiv(a, b):
    return (a + b - 1) // b


def _dice_partials_kernel(x_ref, t_ref, inter_ref, ysum_ref, zsum_ref, *,
                          n_classes, hw, tile, tiles_per_chunk, n_splits,
                          apply_softmax, approx_recip, needs_mask):
    ti = pl.program_id(1)

    @pl.when(ti == 0)
    def _init():
        inter_ref[...] = jnp.zeros_like(inter_ref)
        ysum_ref[...] = jnp.zeros_like(ysum_ref)
        zsum_ref[...] = jnp.zeros_like(zsum_ref)

    x = x_ref[0].astype(jnp.float32)        # (C, TILE)  upcast in-kernel
    labels = t_ref[0].astype(jnp.int32)     # (1, TILE)  narrow ints upcast here

    if apply_softmax:
        m = jnp.max(x, axis=0, keepdims=True)
        e = jnp.exp(x - m)
        s = jnp.sum(e, axis=0, keepdims=True)            # (1, TILE)
        # Per-column reciprocal (EUP) + broadcast multiply instead of a
        # per-element divide over all C*TILE elements.
        x = e * pl.reciprocal(s, approx=approx_recip)

    cls_ids = jax.lax.broadcasted_iota(jnp.int32, (n_classes, 1), 0)  # (C, 1)

    def _accumulate(xv, valid):
        one_hot = labels == cls_ids                      # (C, TILE) bool
        if valid is not None:
            one_hot = jnp.logical_and(one_hot, valid)
            xv = jnp.where(valid, xv, 0.0)               # kills OOB inf/nan
        oh_f = one_hot.astype(jnp.float32)
        inter_ref[0] += jnp.sum(xv * oh_f, axis=1, keepdims=True)
        ysum_ref[0] += jnp.sum(oh_f, axis=1, keepdims=True)
        zsum_ref[0] += jnp.sum(xv * xv, axis=1, keepdims=True)

    if not needs_mask:
        # Spatial axis is exactly covered by the tiling: no mask work at all.
        _accumulate(x, None)
    else:
        if n_splits > 1:
            chunk = pl.program_id(0) % n_splits
            logical_block = chunk * tiles_per_chunk + ti
        else:
            logical_block = ti
        in_bounds = (logical_block + 1) * tile <= hw

        @pl.when(in_bounds)
        def _fast():
            _accumulate(x, None)

        @pl.when(jnp.logical_not(in_bounds))
        def _tail():
            pos = logical_block * tile + jax.lax.broadcasted_iota(
                jnp.int32, (1, tile), 1)
            _accumulate(x, pos < hw)


def dice_loss(inputs, target, weight=None, softmax=False, *,
              tile_bytes=4 << 20, approx_recip=False, spatial_splits=None):
    """Pallas implementation of DiceLoss.forward.

    inputs: (B, C, H, W) float (any float dtype)
    target: (B, 1, H, W) or (B, H, W) integer class labels (any int dtype)
    """
    B, C, H, W = inputs.shape
    HW = H * W

    if target.ndim == 4:
        target = target[:, 0]
    assert target.shape == (B, H, W), 'predict & target shape do not match'

    if weight is None:
        weight = jnp.ones((C,), jnp.float32)
    else:
        weight = jnp.asarray(weight, jnp.float32)
        assert weight.shape == (C,), 'weight must have n_classes entries'

    # Free reshapes (contiguous): NO channel transpose, NO host softmax pass,
    # NO padding copy, NO label dtype cast (narrow ints go straight to DMA).
    x = inputs.reshape(B, C, HW)
    if not jnp.issubdtype(target.dtype, jnp.integer):
        target = target.astype(jnp.int32)
    t = target.reshape(B, 1, HW)

    # Lane-aligned spatial tile targeting ~tile_bytes of logits per block.
    itemsize = jnp.dtype(x.dtype).itemsize
    tile = max(LANE, (tile_bytes // (C * itemsize)) // LANE * LANE)
    tile = min(tile, _round_up(HW, LANE))
    n_tiles = _cdiv(HW, tile)

    # v7x megacore: with B == 1 split the spatial tiles into 2 parallel chunks
    # so the 'parallel' grid extent is >= 2.  No-op on v5e/v6e.
    if spatial_splits is None:
        spatial_splits = 2 if B == 1 else 1
    n_splits = max(1, min(spatial_splits, n_tiles))
    tiles_per_chunk = _cdiv(n_tiles, n_splits)
    # Any block overruns HW (ragged tail, or duplicated block from an odd
    # split)?  If not, the kernel emits zero masking code.
    needs_mask = (n_splits * tiles_per_chunk * tile) != HW

    if n_splits == 1:
        x_map = lambda b, ti_: (b, 0, ti_)
    else:
        def x_map(g, ti_):
            blk = (g % n_splits) * tiles_per_chunk + ti_
            # Keep the DMA start in-bounds; duplicated blocks are fully masked
            # inside the kernel via their *logical* position.
            blk = jnp.minimum(blk, n_tiles - 1)
            return (g // n_splits, 0, blk)
    t_map = x_map

    out_shape = tuple(jax.ShapeDtypeStruct((B * n_splits, C, 1), jnp.float32)
                      for _ in range(3))
    out_spec = pl.BlockSpec((1, C, 1), lambda g, ti_: (g, 0, 0))

    kernel = partial(_dice_partials_kernel, n_classes=C, hw=HW, tile=tile,
                     tiles_per_chunk=tiles_per_chunk, n_splits=n_splits,
                     apply_softmax=softmax, approx_recip=approx_recip,
                     needs_mask=needs_mask)

    inter_p, ysum_p, zsum_p = pl.pallas_call(
        kernel,
        out_shape=out_shape,
        grid_spec=pltpu.PrefetchScalarGridSpec(
            num_scalar_prefetch=0,
            grid=(B * n_splits, tiles_per_chunk),
            in_specs=[
                pl.BlockSpec((1, C, tile), x_map),   # logits
                pl.BlockSpec((1, 1, tile), t_map),   # labels (native int dtype)
            ],
            out_specs=[out_spec, out_spec, out_spec],
        ),
        compiler_params=pltpu.CompilerParams(
            dimension_semantics=("parallel", "arbitrary")),
    )(x, t)

    # Tiny finalization in JAX: sum per-(batch,chunk) partials, per-class dice.
    intersect = jnp.sum(inter_p[:, :, 0], axis=0)   # (C,)
    y_sum = jnp.sum(ysum_p[:, :, 0], axis=0)        # (C,)
    z_sum = jnp.sum(zsum_p[:, :, 0], axis=0)        # (C,)
    dice = 1.0 - (2.0 * intersect + SMOOTH) / (z_sum + y_sum + SMOOTH)
    return jnp.sum(dice * weight) / C


def _reference(inputs, target, weight=None, softmax=False):
    # Pure-JAX reference mirroring the PyTorch module (f32 math).
    B, C, H, W = inputs.shape
    x = inputs.astype(jnp.float32)
    if softmax:
        x = jax.nn.softmax(x, axis=1)
    if target.ndim == 4:
        target = target[:, 0]
    one_hot = (target[:, None, :, :].astype(jnp.int32) ==
               jnp.arange(C, dtype=jnp.int32)[None, :, None, None]
               ).astype(jnp.float32)
    if weight is None:
        weight = [1.0] * C
    loss = 0.0
    for i in range(C):
        s = x[:, i]
        tt = one_hot[:, i]
        inter = jnp.sum(s * tt)
        y_sum = jnp.sum(tt * tt)
        z_sum = jnp.sum(s * s)
        dice = 1.0 - (2.0 * inter + SMOOTH) / (z_sum + y_sum + SMOOTH)
        loss = loss + dice * weight[i]
    return loss / C


if __name__ == "__main__":
    key = jax.random.PRNGKey(0)
    k1, k2, k3, k4 = jax.random.split(key, 4)

    # ---- Test 1: fused softmax, exact reciprocal (default path). -----------
    B, C, H, W = 2, 4, 16, 16
    logits = jax.random.normal(k1, (B, C, H, W), jnp.float32)
    labels = jax.random.randint(k2, (B, 1, H, W), 0, C, jnp.int32)

    out = jax.block_until_ready(dice_loss(logits, labels, softmax=True))
    ref = _reference(logits, labels, softmax=True)
    assert jnp.allclose(out, ref, rtol=1e-5, atol=1e-6), (out, ref)

    # ---- Test 2: weighted, no softmax. --------------------------------------
    w = [0.5, 1.0, 1.5, 2.0]
    out2 = jax.block_until_ready(
        dice_loss(logits, labels, weight=w, softmax=False))
    ref2 = _reference(logits, labels, weight=w, softmax=False)
    assert jnp.allclose(out2, ref2, rtol=1e-5, atol=1e-6), (out2, ref2)

    # ---- Test 3: approximate-reciprocal softmax (EUP path), loose tol. ------
    out3 = jax.block_until_ready(
        dice_loss(logits, labels, softmax=True, approx_recip=True))
    assert jnp.allclose(out3, ref, rtol=5e-3, atol=5e-3), (out3, ref)

    # ---- Test 4: ragged spatial tail, B == 1 (2-way parallel spatial split),
    #      narrow int8 labels, forced-small tile -> exercises multi-tile
    #      accumulation plus boundary- and duplicated-block masking. ----------
    B2, C2, H2, W2 = 1, 3, 23, 23
    logits2 = jax.random.normal(k3, (B2, C2, H2, W2), jnp.float32)
    labels2 = jax.random.randint(k4, (B2, 1, H2, W2), 0, C2,
                                 jnp.int32).astype(jnp.int8)
    out4 = jax.block_until_ready(
        dice_loss(logits2, labels2, softmax=True, tile_bytes=4096))
    ref4 = _reference(logits2, labels2, softmax=True)
    assert jnp.allclose(out4, ref4, rtol=1e-4, atol=1e-5), (out4, ref4)

    print("KERNEL_OK")
</pallas_src>

<mosaic_0001>
module attributes {stable_mosaic.version = 11 : i64} {
  func.func @_dice_partials_kernel(%arg0: i32, %arg1: i32, %arg2: memref<1x4x256xf32, #tpu.memory_space<vmem>>, %arg3: memref<1x1x256xi32, #tpu.memory_space<vmem>>, %arg4: memref<1x4x1xf32, #tpu.memory_space<vmem>>, %arg5: memref<1x4x1xf32, #tpu.memory_space<vmem>>, %arg6: memref<1x4x1xf32, #tpu.memory_space<vmem>>) attributes {dimension_semantics = [#tpu.dimension_semantics<parallel>, #tpu.dimension_semantics<arbitrary>], iteration_bounds = array<i64: 2, 1>, scalar_prefetch = 0 : i64, scratch_operands = 0 : i64, tpu.core_type = #tpu.core_type<tc>, window_params = [{transform_indices = @transform_0, window_bounds = array<i64: 1, 4, 256>}, {transform_indices = @transform_1, window_bounds = array<i64: 1, 1, 256>}, {transform_indices = @transform_2, window_bounds = array<i64: 1, 4, 1>}, {transform_indices = @transform_3, window_bounds = array<i64: 1, 4, 1>}, {transform_indices = @transform_4, window_bounds = array<i64: 1, 4, 1>}]} {
    %c0_i32 = arith.constant 0 : i32
    %0 = arith.cmpi eq, %arg1, %c0_i32 : i32
    %1 = arith.extui %0 : i1 to i32
    %c0_i32_0 = arith.constant 0 : i32
    %2 = arith.cmpi ne, %1, %c0_i32_0 : i32
    scf.if %2 {
      %cst_28 = arith.constant 0.000000e+00 : f32
      %49 = vector.broadcast %cst_28 : f32 to vector<1x4x1xf32>
      %c0_29 = arith.constant 0 : index
      %c0_30 = arith.constant 0 : index
      %c0_31 = arith.constant 0 : index
      %50 = vector.load %arg4[%c0_29, %c0_30, %c0_31] : memref<1x4x1xf32, #tpu.memory_space<vmem>>, vector<1x4x1xf32>
      tpu.vector_store %arg4[%c0_29, %c0_30, %c0_31], %49 {strides = array<i32>} : memref<1x4x1xf32, #tpu.memory_space<vmem>>, vector<1x4x1xf32>,
      %cst_32 = arith.constant 0.000000e+00 : f32
      %51 = vector.broadcast %cst_32 : f32 to vector<1x4x1xf32>
      %c0_33 = arith.constant 0 : index
      %c0_34 = arith.constant 0 : index
      %c0_35 = arith.constant 0 : index
      %52 = vector.load %arg5[%c0_33, %c0_34, %c0_35] : memref<1x4x1xf32, #tpu.memory_space<vmem>>, vector<1x4x1xf32>
      tpu.vector_store %arg5[%c0_33, %c0_34, %c0_35], %51 {strides = array<i32>} : memref<1x4x1xf32, #tpu.memory_space<vmem>>, vector<1x4x1xf32>,
      %cst_36 = arith.constant 0.000000e+00 : f32
      %53 = vector.broadcast %cst_36 : f32 to vector<1x4x1xf32>
      %c0_37 = arith.constant 0 : index
      %c0_38 = arith.constant 0 : index
      %c0_39 = arith.constant 0 : index
      %54 = vector.load %arg6[%c0_37, %c0_38, %c0_39] : memref<1x4x1xf32, #tpu.memory_space<vmem>>, vector<1x4x1xf32>
      tpu.vector_store %arg6[%c0_37, %c0_38, %c0_39], %53 {strides = array<i32>} : memref<1x4x1xf32, #tpu.memory_space<vmem>>, vector<1x4x1xf32>,
    } else {
    }
    %c0 = arith.constant 0 : index
    %c0_1 = arith.constant 0 : index
    %c0_2 = arith.constant 0 : index
    %3 = vector.load %arg2[%c0, %c0_1, %c0_2] : memref<1x4x256xf32, #tpu.memory_space<vmem>>, vector<1x4x256xf32>
    %4 = vector.shape_cast %3 : vector<1x4x256xf32> to vector<4x256xf32>
    %c0_3 = arith.constant 0 : index
    %c0_4 = arith.constant 0 : index
    %c0_5 = arith.constant 0 : index
    %5 = vector.load %arg3[%c0_3, %c0_4, %c0_5] : memref<1x1x256xi32, #tpu.memory_space<vmem>>, vector<1x1x256xi32>
    %6 = vector.shape_cast %5 : vector<1x1x256xi32> to vector<1x256xi32>
    %cst = arith.constant dense<0xFF800000> : vector<256xf32>
    %7 = vector.multi_reduction <maximumf>, %4, %cst [0] : vector<4x256xf32> to vector<256xf32>
    %8 = vector.shape_cast %7 : vector<256xf32> to vector<1x256xf32>
    %9 = vector.broadcast %8 : vector<1x256xf32> to vector<4x256xf32>
    %10 = arith.subf %4, %9 : vector<4x256xf32>
    %11 = math.exp %10 : vector<4x256xf32>
    %cst_6 = arith.constant dense<0.000000e+00> : vector<256xf32>
    %12 = vector.multi_reduction <add>, %11, %cst_6 [0] : vector<4x256xf32> to vector<256xf32>
    %13 = vector.shape_cast %12 : vector<256xf32> to vector<1x256xf32>
    %14 = tpu.reciprocal %13 : vector<1x256xf32> -> vector<1x256xf32>
    %15 = vector.broadcast %14 : vector<1x256xf32> to vector<4x256xf32>
    %16 = arith.mulf %11, %15 : vector<4x256xf32>
    %17 = tpu.iota {dimensions = array<i32: 0>} : vector<4x1xi32>
    %18 = vector.broadcast %6 : vector<1x256xi32> to vector<4x256xi32>
    %19 = vector.broadcast %17 : vector<4x1xi32> to vector<4x256xi32>
    %20 = arith.cmpi eq, %18, %19 : vector<4x256xi32>
    %21 = arith.extui %20 : vector<4x256xi1> to vector<4x256xi32>
    %22 = arith.sitofp %21 : vector<4x256xi32> to vector<4x256xf32>
    %c0_7 = arith.constant 0 : index
    %c0_8 = arith.constant 0 : index
    %c0_9 = arith.constant 0 : index
    %23 = vector.load %arg4[%c0_7, %c0_8, %c0_9] : memref<1x4x1xf32, #tpu.memory_space<vmem>>, vector<1x4x1xf32>
    %24 = vector.shape_cast %23 : vector<1x4x1xf32> to vector<4x1xf32>
    %25 = arith.mulf %16, %22 : vector<4x256xf32>
    %cst_10 = arith.constant dense<0.000000e+00> : vector<4xf32>
    %26 = vector.multi_reduction <add>, %25, %cst_10 [1] : vector<4x256xf32> to vector<4xf32>
    %27 = vector.shape_cast %26 : vector<4xf32> to vector<4x1xf32>
    %28 = arith.addf %24, %27 : vector<4x1xf32>
    %c0_11 = arith.constant 0 : index
    %c0_12 = arith.constant 0 : index
    %c0_13 = arith.constant 0 : index
    %29 = vector.load %arg4[%c0_11, %c0_12, %c0_13] : memref<1x4x1xf32, #tpu.memory_space<vmem>>, vector<1x4x1xf32>
    %30 = vector.shape_cast %29 : vector<1x4x1xf32> to vector<4x1xf32>
    %31 = vector.shape_cast %28 : vector<4x1xf32> to vector<1x4x1xf32>
    tpu.vector_store %arg4[%c0_11, %c0_12, %c0_13], %31 {strides = array<i32>} : memref<1x4x1xf32, #tpu.memory_space<vmem>>, vector<1x4x1xf32>,
    %c0_14 = arith.constant 0 : index
    %c0_15 = arith.constant 0 : index
    %c0_16 = arith.constant 0 : index
    %32 = vector.load %arg5[%c0_14, %c0_15, %c0_16] : memref<1x4x1xf32, #tpu.memory_space<vmem>>, vector<1x4x1xf32>
    %33 = vector.shape_cast %32 : vector<1x4x1xf32> to vector<4x1xf32>
    %cst_17 = arith.constant dense<0.000000e+00> : vector<4xf32>
    %34 = vector.multi_reduction <add>, %22, %cst_17 [1] : vector<4x256xf32> to vector<4xf32>
    %35 = vector.shape_cast %34 : vector<4xf32> to vector<4x1xf32>
    %36 = arith.addf %33, %35 : vector<4x1xf32>
    %c0_18 = arith.constant 0 : index
    %c0_19 = arith.constant 0 : index
    %c0_20 = arith.constant 0 : index
    %37 = vector.load %arg5[%c0_18, %c0_19, %c0_20] : memref<1x4x1xf32, #tpu.memory_space<vmem>>, vector<1x4x1xf32>
    %38 = vector.shape_cast %37 : vector<1x4x1xf32> to vector<4x1xf32>
    %39 = vector.shape_cast %36 : vector<4x1xf32> to vector<1x4x1xf32>
    tpu.vector_store %arg5[%c0_18, %c0_19, %c0_20], %39 {strides = array<i32>} : memref<1x4x1xf32, #tpu.memory_space<vmem>>, vector<1x4x1xf32>,
    %c0_21 = arith.constant 0 : index
    %c0_22 = arith.constant 0 : index
    %c0_23 = arith.constant 0 : index
    %40 = vector.load %arg6[%c0_21, %c0_22, %c0_23] : memref<1x4x1xf32, #tpu.memory_space<vmem>>, vector<1x4x1xf32>
    %41 = vector.shape_cast %40 : vector<1x4x1xf32> to vector<4x1xf32>
    %42 = arith.mulf %16, %16 : vector<4x256xf32>
    %cst_24 = arith.constant dense<0.000000e+00> : vector<4xf32>
    %43 = vector.multi_reduction <add>, %42, %cst_24 [1] : vector<4x256xf32> to vector<4xf32>
    %44 = vector.shape_cast %43 : vector<4xf32> to vector<4x1xf32>
    %45 = arith.addf %41, %44 : vector<4x1xf32>
    %c0_25 = arith.constant 0 : index
    %c0_26 = arith.constant 0 : index
    %c0_27 = arith.constant 0 : index
    %46 = vector.load %arg6[%c0_25, %c0_26, %c0_27] : memref<1x4x1xf32, #tpu.memory_space<vmem>>, vector<1x4x1xf32>
    %47 = vector.shape_cast %46 : vector<1x4x1xf32> to vector<4x1xf32>
    %48 = vector.shape_cast %45 : vector<4x1xf32> to vector<1x4x1xf32>
    tpu.vector_store %arg6[%c0_25, %c0_26, %c0_27], %48 {strides = array<i32>} : memref<1x4x1xf32, #tpu.memory_space<vmem>>, vector<1x4x1xf32>,
    return
  }
  func.func @transform_0(%arg0: i32, %arg1: i32) -> (i32, i32, i32) {
    %c0_i32 = arith.constant 0 : i32
    %c0_i32_0 = arith.constant 0 : i32
    return %arg0, %c0_i32, %arg1 : i32, i32, i32
  }
  func.func @transform_1(%arg0: i32, %arg1: i32) -> (i32, i32, i32) {
    %c0_i32 = arith.constant 0 : i32
    %c0_i32_0 = arith.constant 0 : i32
    return %arg0, %c0_i32, %arg1 : i32, i32, i32
  }
  func.func @transform_2(%arg0: i32, %arg1: i32) -> (i32, i32, i32) {
    %c0_i32 = arith.constant 0 : i32
    %c0_i32_0 = arith.constant 0 : i32
    %c0_i32_1 = arith.constant 0 : i32
    return %arg0, %c0_i32, %c0_i32_0 : i32, i32, i32
  }
  func.func @transform_3(%arg0: i32, %arg1: i32) -> (i32, i32, i32) {
    %c0_i32 = arith.constant 0 : i32
    %c0_i32_0 = arith.constant 0 : i32
    %c0_i32_1 = arith.constant 0 : i32
    return %arg0, %c0_i32, %c0_i32_0 : i32, i32, i32
  }
  func.func @transform_4(%arg0: i32, %arg1: i32) -> (i32, i32, i32) {
    %c0_i32 = arith.constant 0 : i32
    %c0_i32_0 = arith.constant 0 : i32
    %c0_i32_1 = arith.constant 0 : i32
    return %arg0, %c0_i32, %c0_i32_0 : i32, i32, i32
  }
}

</mosaic_0001>

<llo_original>
// kernel: tpu_custom_call.1
$region0: #{tpu_custom_call.1}
  #allocation0 [shape = 'u32[]', space=smem, size = 0x4, offset = 0x4, fixed_abs, tag = 'smem constant byte address 0x4 - core index']
  #allocation1 [shape = 'u32[144,128]{1,0:T(1,128)}', space=vmem, size = 0x12000, scoped, tag = 'internal scratch']
  %s0 = inlined_call_operand.hbm [shape: f32[2,4,256], index: 0, kind: input, shape index: {}]
  %s1 = inlined_call_operand.hbm [shape: s32[2,1,256], index: 1, kind: input, shape index: {}]
  %s2 = inlined_call_operand.vmem [shape: f32[2,4,1], index: 2, kind: output, shape index: {0}]
  %s3 = inlined_call_operand.vmem [shape: f32[2,4,1], index: 3, kind: output, shape index: {1}]
  %s4 = inlined_call_operand.vmem [shape: f32[2,4,1], index: 4, kind: output, shape index: {2}]
  %5 = xla_tuple %s2, %s3, %s4
  %s6 = sld [smem:[#allocation0]]
  $region69: #{tpu_custom_call.1} parent=0
    _
  %s8 = ssub.s32 1, %s6
  %s9 = scalar_select 0, %s8, %s6
  $region1: #{tpu_custom_call.1} parent=0
    #allocation2 [shape = 'u8[8192]{0}', space=vmem, size = 0x2000, scoped, tag = 'input window, operand 0']
    #allocation3 [shape = 's32[2]{0}', space=sflag, size = 0x8, scoped, tag = 'scoped memory for tpu_custom_call.1']
    #allocation4 [shape = 'u8[2048]{0}', space=vmem, size = 0x800, scoped, tag = 'input window, operand 1']
    #allocation5 [shape = 's32[2]{0}', space=sflag, size = 0x8, scoped, tag = 'scoped memory for tpu_custom_call.1']
    %10 = vsyncpa [#allocation3], 0
    %s11 = scalar_lea.sflag [#allocation3], 1
    %12 = vsyncpa %s11, 0
    %13 = vsyncpa [#allocation5], 0
    %s14 = scalar_lea.sflag [#allocation5], 1
    %15 = vsyncpa %s14, 0
    loop: start=0, step=1, limit=4
    $region2: #{tpu_custom_call.1} parent=1 // loop_pre_header
      _
    $region3: #{tpu_custom_call.1} parent=1 // loop_header
      %s17 = sphi 0, %s21
      %p18 = scmp.ge.s32.totalorder %s17, 4
      %s24 = sphi 0, %s36
      %s25 = sphi 0, %s32
      %s26 = sphi 0, %s24
      %s27 = sphi 0, %s25
      %s28 = sphi 0, %s26
      %s29 = sphi 0, %s27
      %s41 = sphi 0, %s43
      %s44 = sphi 0, %s41
      %s45 = sphi 0, %s44
      %s61 = sphi 0, %s45
      %s69 = sphi 0, %s71
      %s72 = sphi 0, %s69
      %s73 = sphi 0, %s72
      %s89 = sphi 0, %s73
      %s95 = sphi 0, %s97
      %s98 = sphi 0, %s95
      %s99 = sphi 0, %s98
      %s115 = sphi 0, %s99
      %s121 = sphi 0, %s123
      %s124 = sphi 0, %s121
      %s125 = sphi 0, %s124
      %s141 = sphi 0, %s125
      %s147 = sphi 0, %s149
      %s150 = sphi 0, %s147
      %s151 = sphi 0, %s150
      %s167 = sphi 0, %s151
    $region4: #{tpu_custom_call.1} parent=1 // loop_header_branch
      %20 = sbr.rel (%p18) target = $region8
    $region5: #{tpu_custom_call.1} parent=1 // loop_body
      %s22 = ssub.s32 %s17, 1
      %s23 = ssub.s32 %s17, 2
      %s30 = sadd.s32 1, %s25
      %p31 = scmp.ge.s32.totalorder %s30, 1
      %s32 = scalar_select %p31, 0, %s30
      %s33 = sadd.s32 1, %s24
      %s34 = scalar_select %p31, %s33, %s24
      %p35 = scmp.ge.s32.totalorder %s34, 2
      %s36 = scalar_select %p35, 0, %s34
      %s37 = ssub.s32 %s24, %s36
      %s38 = ssub.s32 %s25, %s32
      %s39 = sor.u32 %s37, %s38
      %p40 = scmp.eq.s32.totalorder %s39, 0
      %s42 = sadd.s32 %s41, 1
      %s43 = scalar_select %p40, %s41, %s42
      %p46 = pneg %p40
      %p47 = scmp.eq.s32.totalorder %s17, 1
      %p48 = por %p46, %p47
      %p49 = scmp.ne.s32.totalorder %s41, %s44
      %p50 = scmp.eq.s32.totalorder %s17, 0
      %p51 = por %p49, %p50
      %p52 = scmp.ne.s32.totalorder %s41, %s44
      %p53 = scmp.eq.s32.totalorder %s22, 1
      %p54 = por %p52, %p53
      %p55 = scmp.ne.s32.totalorder %s44, %s45
      %p56 = scmp.eq.s32.totalorder %s22, 0
      %p57 = por %p55, %p56
      %p58 = scmp.ne.s32.totalorder %s44, %s45
      %p59 = scmp.eq.s32.totalorder %s23, 1
      %p60 = por %p58, %p59
      %p62 = scmp.ne.s32.totalorder %s45, %s61
      %p63 = scmp.eq.s32.totalorder %s23, 0
      %p64 = por %p62, %p63
      %s65 = ssub.s32 %s24, %s36
      %s66 = ssub.s32 %s25, %s32
      %s67 = sor.u32 %s65, %s66
      %p68 = scmp.eq.s32.totalorder %s67, 0
      %s70 = sadd.s32 %s69, 1
      %s71 = scalar_select %p68, %s69, %s70
      %p74 = pneg %p68
      %p75 = scmp.eq.s32.totalorder %s17, 1
      %p76 = por %p74, %p75
      %p77 = scmp.ne.s32.totalorder %s69, %s72
      %p78 = scmp.eq.s32.totalorder %s17, 0
      %p79 = por %p77, %p78
      %p80 = scmp.ne.s32.totalorder %s69, %s72
      %p81 = scmp.eq.s32.totalorder %s22, 1
      %p82 = por %p80, %p81
      %p83 = scmp.ne.s32.totalorder %s72, %s73
      %p84 = scmp.eq.s32.totalorder %s22, 0
      %p85 = por %p83, %p84
      %p86 = scmp.ne.s32.totalorder %s72, %s73
      %p87 = scmp.eq.s32.totalorder %s23, 1
      %p88 = por %p86, %p87
      %p90 = scmp.ne.s32.totalorder %s73, %s89
      %p91 = scmp.eq.s32.totalorder %s23, 0
      %p92 = por %p90, %p91
      %s93 = ssub.s32 %s24, %s36
      %p94 = scmp.eq.s32.totalorder %s93, 0
      %s96 = sadd.s32 %s95, 1
      %s97 = scalar_select %p94, %s95, %s96
      %p100 = pneg %p94
      %p101 = scmp.eq.s32.totalorder %s17, 1
      %p102 = por %p100, %p101
      %p103 = scmp.ne.s32.totalorder %s95, %s98
      %p104 = scmp.eq.s32.totalorder %s17, 0
      %p105 = por %p103, %p104
      %p106 = scmp.ne.s32.totalorder %s95, %s98
      %p107 = scmp.eq.s32.totalorder %s22, 1
      %p108 = por %p106, %p107
      %p109 = scmp.ne.s32.totalorder %s98, %s99
      %p110 = scmp.eq.s32.totalorder %s22, 0
      %p111 = por %p109, %p110
      %p112 = scmp.ne.s32.totalorder %s98, %s99
      %p113 = scmp.eq.s32.totalorder %s23, 1
      %p114 = por %p112, %p113
      %p116 = scmp.ne.s32.totalorder %s99, %s115
      %p117 = scmp.eq.s32.totalorder %s23, 0
      %p118 = por %p116, %p117
      %s119 = ssub.s32 %s24, %s36
      %p120 = scmp.eq.s32.totalorder %s119, 0
      %s122 = sadd.s32 %s121, 1
      %s123 = scalar_select %p120, %s121, %s122
      %p126 = pneg %p120
      %p127 = scmp.eq.s32.totalorder %s17, 1
      %p128 = por %p126, %p127
      %p129 = scmp.ne.s32.totalorder %s121, %s124
      %p130 = scmp.eq.s32.totalorder %s17, 0
      %p131 = por %p129, %p130
      %p132 = scmp.ne.s32.totalorder %s121, %s124
      %p133 = scmp.eq.s32.totalorder %s22, 1
      %p134 = por %p132, %p133
      %p135 = scmp.ne.s32.totalorder %s124, %s125
      %p136 = scmp.eq.s32.totalorder %s22, 0
      %p137 = por %p135, %p136
      %p138 = scmp.ne.s32.totalorder %s124, %s125
      %p139 = scmp.eq.s32.totalorder %s23, 1
      %p140 = por %p138, %p139
      %p142 = scmp.ne.s32.totalorder %s125, %s141
      %p143 = scmp.eq.s32.totalorder %s23, 0
      %p144 = por %p142, %p143
      %s145 = ssub.s32 %s24, %s36
      %p146 = scmp.eq.s32.totalorder %s145, 0
      %s148 = sadd.s32 %s147, 1
      %s149 = scalar_select %p146, %s147, %s148
      %p152 = pneg %p146
      %p153 = scmp.eq.s32.totalorder %s17, 1
      %p154 = por %p152, %p153
      %p155 = scmp.ne.s32.totalorder %s147, %s150
      %p156 = scmp.eq.s32.totalorder %s17, 0
      %p157 = por %p155, %p156
      %p158 = scmp.ne.s32.totalorder %s147, %s150
      %p159 = scmp.eq.s32.totalorder %s22, 1
      %p160 = por %p158, %p159
      %p161 = scmp.ne.s32.totalorder %s150, %s151
      %p162 = scmp.eq.s32.totalorder %s22, 0
      %p163 = por %p161, %p162
      %p164 = scmp.ne.s32.totalorder %s150, %s151
      %p165 = scmp.eq.s32.totalorder %s23, 1
      %p166 = por %p164, %p165
      %p168 = scmp.ne.s32.totalorder %s151, %s167
      %p169 = scmp.eq.s32.totalorder %s23, 0
      %p170 = por %p168, %p169
      %p171 = scmp.le.s32.totalorder 1, %s17
      %p172 = scmp.lt.s32.totalorder %s17, 3
      %p173 = pnand %p171, %p172
      %p174 = pneg %p173
      // Predicated region
      $region9: #{tpu_custom_call.1} parent=5 // pred_check
        _
      $region10: #{tpu_custom_call.1} parent=5 // pred_check_branch
        %176 = sbr.rel (%p173) target = $region12
      $region11: #{tpu_custom_call.1} parent=5 // pred_region
        %s177 = ssub.s32 %s17, 1
      $region12: #{tpu_custom_call.1} parent=5 // pred_fallthru
        _
      %p178 = scmp.lt.s32.totalorder %s17, 2
      // Predicated region
      $region13: #{tpu_custom_call.1} parent=5 // pred_check
        %p179 = pneg %p178
      $region14: #{tpu_custom_call.1} parent=5 // pred_check_branch
        %181 = sbr.rel (%p179) target = $region16
      $region15: #{tpu_custom_call.1} parent=5 // pred_region
        // Predicated region
        $region17: #{tpu_custom_call.1} parent=15 // pred_check
          %p182 = pneg %p51
        $region18: #{tpu_custom_call.1} parent=15 // pred_check_branch
          %184 = sbr.rel (%p182) target = $region20
        $region19: #{tpu_custom_call.1} parent=15 // pred_region
          %s185 = sand.u32 %s41, 1
          %s186 = scalar_lea.sflag [#allocation3], %s185
          %s187 = sand.u32 %s41, 1
          %s188 = smul.addr %s187, 8
          %s189 = scalar_lea.vmem [#allocation2], %s188
          %s190 = smul.u32 2, %s25
          %s192 = ssub.s32 128, 128
          %193 = vsyncadd %s186, %s192
          %s194 = smul.addr %s24, 2
          %s195 = sadd.s32 %s190, %s194
          %s196 = smul.addr %s195, 64
          %s197 = scalar_lea.hbm %s0, %s196
          %s199 = sshll.u32 %s189, 4
          %s200 = int_to_ptr.vmem [resolvable:$true] %s199
          %202 = dma.hbm_to_vmem [thread:$0]  %s197, 128, %s200, %s186
        $region20: #{tpu_custom_call.1} parent=15 // pred_fallthru
          _
        // Predicated region
        $region21: #{tpu_custom_call.1} parent=15 // pred_check
          %p203 = pneg %p79
        $region22: #{tpu_custom_call.1} parent=15 // pred_check_branch
          %205 = sbr.rel (%p203) target = $region24
        $region23: #{tpu_custom_call.1} parent=15 // pred_region
          %s206 = sand.u32 %s69, 1
          %s207 = scalar_lea.sflag [#allocation5], %s206
          %s208 = sand.u32 %s69, 1
          %s209 = smul.addr %s208, 2
          %s210 = scalar_lea.vmem [#allocation4], %s209
          %s211 = smul.u32 2, %s25
          %s213 = ssub.s32 32, 32
          %214 = vsyncadd %s207, %s213
          %s215 = smul.addr %s24, 2
          %s216 = sadd.s32 %s211, %s215
          %s217 = smul.addr %s216, 16
          %s218 = scalar_lea.hbm %s1, %s217
          %s220 = sshll.u32 %s210, 4
          %s221 = int_to_ptr.vmem [resolvable:$true] %s220
          %223 = dma.hbm_to_vmem [thread:$0]  %s218, 32, %s221, %s207
        $region24: #{tpu_custom_call.1} parent=15 // pred_fallthru
          _
      $region16: #{tpu_custom_call.1} parent=5 // pred_fallthru
        _
      %p224 = scmp.le.s32.totalorder 1, %s17
      %p225 = scmp.lt.s32.totalorder %s17, 3
      %p226 = pnand %p224, %p225
      %p227 = pneg %p226
      // Predicated region
      $region25: #{tpu_custom_call.1} parent=5 // pred_check
        _
      $region26: #{tpu_custom_call.1} parent=5 // pred_check_branch
        %229 = sbr.rel (%p226) target = $region28
      $region27: #{tpu_custom_call.1} parent=5 // pred_region
        %s230 = ssub.s32 %s17, 1
        %s231 = sand.u32 %s44, 1
        %s232 = scalar_lea.sflag [#allocation3], %s231
        %s233 = sand.u32 %s44, 1
        %s234 = smul.addr %s233, 8
        %s235 = scalar_lea.vmem [#allocation2], %s234
        // Predicated region
        $region29: #{tpu_custom_call.1} parent=27 // pred_check
          %p236 = pneg %p57
        $region30: #{tpu_custom_call.1} parent=27 // pred_check_branch
          %238 = sbr.rel (%p236) target = $region32
        $region31: #{tpu_custom_call.1} parent=27 // pred_region
          %239 = dma.done %s232, 128
        $region32: #{tpu_custom_call.1} parent=27 // pred_fallthru
          _
        %s240 = sand.u32 %s72, 1
        %s241 = scalar_lea.sflag [#allocation5], %s240
        %s242 = sand.u32 %s72, 1
        %s243 = smul.addr %s242, 2
        %s244 = scalar_lea.vmem [#allocation4], %s243
        // Predicated region
        $region33: #{tpu_custom_call.1} parent=27 // pred_check
          %p245 = pneg %p85
        $region34: #{tpu_custom_call.1} parent=27 // pred_check_branch
          %247 = sbr.rel (%p245) target = $region36
        $region35: #{tpu_custom_call.1} parent=27 // pred_region
          %248 = dma.done %s241, 32
        $region36: #{tpu_custom_call.1} parent=27 // pred_fallthru
          _
        %s249 = sand.u32 %s44, 1
        %s250 = scalar_lea.sflag [#allocation3], %s249
        %s251 = sand.u32 %s44, 1
        %s252 = smul.addr %s251, 8
        %s253 = scalar_lea.vmem [#allocation2], %s252
        %p254 = pneg %p57
        %p255 = pneg %p54
        %s256 = sand.u32 %s72, 1
        %s257 = scalar_lea.sflag [#allocation5], %s256
        %s258 = sand.u32 %s72, 1
        %s259 = smul.addr %s258, 2
        %s260 = scalar_lea.vmem [#allocation4], %s259
        %p261 = pneg %p85
        %p262 = pneg %p82
        %p263 = pneg %p111
        %p264 = pneg %p108
        %p265 = scmp.lt.s32.totalorder %s26, 1
        %s266 = scalar_select %p265, %s26, 1
        %s267 = smul.addr %s266, 4
        %s268 = scalar_lea.vmem %s2, %s267
        %p269 = pneg %p137
        %p270 = pneg %p134
        %p271 = scmp.lt.s32.totalorder %s26, 1
        %s272 = scalar_select %p271, %s26, 1
        %s273 = smul.addr %s272, 4
        %s274 = scalar_lea.vmem %s3, %s273
        %p275 = pneg %p163
        %p276 = pneg %p160
        %p277 = scmp.lt.s32.totalorder %s26, 1
        %s278 = scalar_select %p277, %s26, 1
        %s279 = smul.addr %s278, 4
        %s280 = scalar_lea.vmem %s4, %s279
        %s281 = smul.u32 2, %s27
        %s282 = smul.u32 2, %s27
        %p283 = scmp.lt.s32.totalorder %s26, 1
        %s284 = scalar_select %p283, %s26, 1
        %s285 = smul.addr %s284, 4
        %s286 = scalar_lea.vmem %s2, %s285
        %p287 = scmp.lt.s32.totalorder %s26, 1
        %s288 = scalar_select %p287, %s26, 1
        %s289 = smul.addr %s288, 4
        %s290 = scalar_lea.vmem %s3, %s289
        %p291 = scmp.lt.s32.totalorder %s26, 1
        %s292 = scalar_select %p291, %s26, 1
        %s293 = smul.addr %s292, 4
        %s294 = scalar_lea.vmem %s4, %s293
        %p295 = scmp.eq.s32.totalorder %s27, 0
        // Predicated region
        $region37: #{tpu_custom_call.1} parent=27 // pred_check
          %p296 = pneg %p295
        $region38: #{tpu_custom_call.1} parent=27 // pred_check_branch
          %298 = sbr.rel (%p296) target = $region40
        $region39: #{tpu_custom_call.1} parent=27 // pred_region
          %vm299 = vcmask 3072
          %300 = vst.msk [vmem:[%s286] sm:$0xf] %vm299, 0.0
          %301 = vst.msk [vmem:[%s290] sm:$0xf] %vm299, 0.0
          %302 = vst.msk [vmem:[%s294] sm:$0xf] %vm299, 0.0
        $region40: #{tpu_custom_call.1} parent=27 // pred_fallthru
          _
        %v303 = vld [vmem:[%s235] sm:$0xff]
        %v304 = vld [vmem:[%s244] sm:$0x3]
        %v306 = vcombine.high %v303, %v303
        %vm308 = vcmask 1043456
        %v309 = vsel %vm308, %v303, -inf
        %v310 = vrot.slane %v309, 4
        %v311 = vmax.f32 %v309, %v310
        %v312 = vrot.slane %v311, 2
        %v313 = vmax.f32 %v311, %v312
        %v314 = vrot.slane %v313, 1
        %v315 = vmax.f32 %v313, %v314
        %v316 = vsel %vm308, %v306, -inf
        %v317 = vrot.slane %v316, 4
        %v318 = vmax.f32 %v316, %v317
        %v319 = vrot.slane %v318, 2
        %v320 = vmax.f32 %v318, %v319
        %v321 = vrot.slane %v320, 1
        %v322 = vmax.f32 %v320, %v321
        %v325 = vcombine.low %v315, %v322
        %v327 = vsub.f32 %v303, %v325
        %v328 = vmul.f32 %v327, 1.442695
        %v329 = vpow.pop %v328
        %v331 = vcombine.high %v329, %v329
        %v333 = vsel %vm308, %v329, 0.0
        %v334 = vrot.slane %v333, 4
        %v335 = vadd.f32 %v333, %v334
        %v336 = vrot.slane %v335, 2
        %v337 = vadd.f32 %v335, %v336
        %v338 = vrot.slane %v337, 1
        %v339 = vadd.f32 %v337, %v338
        %v340 = vsel %vm308, %v331, 0.0
        %v341 = vrot.slane %v340, 4
        %v342 = vadd.f32 %v340, %v341
        %v343 = vrot.slane %v342, 2
        %v344 = vadd.f32 %v342, %v343
        %v345 = vrot.slane %v344, 1
        %v346 = vadd.f32 %v344, %v345
        %v347 = vrcp.pop %v339
        %v348 = vrcp.pop %v346
        %v351 = vcombine.low %v347, %v348
        %v353 = vmul.f32 %v329, %v351
        %v354 = vlaneseq
        %v355 = vshrl.u32 %v354, 7
        %v356 = vlaneseq
        %v357 = vshrl.u32 %v356, 7
        %v358 = vsub.s32 0, %v357
        %v359 = vrot.slane %v304, %v358
        %v360 = vlaneseq
        %v361 = vshrl.u32 %v360, 7
        %v362 = vsub.s32 1, %v361
        %v363 = vrot.slane %v304, %v362
        %vm364 = vcmp.eq.s32.totalorder %v359, %v355
        %vm365 = vcmp.eq.s32.totalorder %v363, %v355
        %v366 = vsel %vm364, 1, 0
        %v367 = vsel %vm365, 1, 0
        %v368 = vcvt.s32.f32 %v366
        %v369 = vcvt.s32.f32 %v367
        %v370 = vld [vmem:[%s286] sm:$0xf]
        %v373 = vcombine.low %v368, %v369
        %v375 = vmul.f32 %v353, %v373
        %v377 = vcombine.high %v375, %v375
        %v379 = vsel %vm308, %v375, 0.0
        %v380 = vsel %vm308, %v377, 0.0
        %v381 = vadd.f32 %v379, %v380
        %382 = vadd.xlane.f32.xlu0 %v381
        %v383 = vpop.xlane.xlu0 %382
        %v384 = vadd.f32 %v370, %v383
        %vm385 = vcmask 3072
        %386 = vst.msk [vmem:[%s286] sm:$0xf] %vm385, %v384
        %v387 = vld [vmem:[%s290] sm:$0xf]
        %v388 = vsel %vm308, %v368, 0.0
        %v389 = vsel %vm308, %v369, 0.0
        %v390 = vadd.f32 %v388, %v389
        %391 = vadd.xlane.f32.xlu0 %v390
        %v392 = vpop.xlane.xlu0 %391
        %v393 = vadd.f32 %v387, %v392
        %394 = vst.msk [vmem:[%s290] sm:$0xf] %vm385, %v393
        %v395 = vld [vmem:[%s294] sm:$0xf]
        %v396 = vmul.f32 %v353, %v353
        %v398 = vcombine.high %v396, %v396
        %v400 = vsel %vm308, %v396, 0.0
        %v401 = vsel %vm308, %v398, 0.0
        %v402 = vadd.f32 %v400, %v401
        %403 = vadd.xlane.f32.xlu0 %v402
        %v404 = vpop.xlane.xlu0 %403
        %v405 = vadd.f32 %v395, %v404
        %406 = vst.msk [vmem:[%s294] sm:$0xf] %vm385, %v405
        %p407 = scmp.lt.s32.totalorder %s26, 1
        %s408 = scalar_select %p407, %s26, 1
        %s409 = smul.addr %s408, 4
        %s410 = scalar_lea.vmem %s2, %s409
        %p411 = scmp.lt.s32.totalorder %s26, 1
        %s412 = scalar_select %p411, %s26, 1
        %s413 = smul.addr %s412, 4
        %s414 = scalar_lea.vmem %s3, %s413
        %p415 = scmp.lt.s32.totalorder %s26, 1
        %s416 = scalar_select %p415, %s26, 1
        %s417 = smul.addr %s416, 4
        %s418 = scalar_lea.vmem %s4, %s417
        // Predicated region
        $region41: #{tpu_custom_call.1} parent=27 // pred_check
          %p419 = pneg %p108
        $region42: #{tpu_custom_call.1} parent=27 // pred_check_branch
          %421 = sbr.rel (%p419) target = $region44
        $region43: #{tpu_custom_call.1} parent=27 // pred_region
          _
        $region44: #{tpu_custom_call.1} parent=27 // pred_fallthru
          _
        // Predicated region
        $region45: #{tpu_custom_call.1} parent=27 // pred_check
          %p422 = pneg %p134
        $region46: #{tpu_custom_call.1} parent=27 // pred_check_branch
          %424 = sbr.rel (%p422) target = $region48
        $region47: #{tpu_custom_call.1} parent=27 // pred_region
          _
        $region48: #{tpu_custom_call.1} parent=27 // pred_fallthru
          _
        // Predicated region
        $region49: #{tpu_custom_call.1} parent=27 // pred_check
          %p425 = pneg %p160
        $region50: #{tpu_custom_call.1} parent=27 // pred_check_branch
          %427 = sbr.rel (%p425) target = $region52
        $region51: #{tpu_custom_call.1} parent=27 // pred_region
          _
        $region52: #{tpu_custom_call.1} parent=27 // pred_fallthru
          _
      $region28: #{tpu_custom_call.1} parent=5 // pred_fallthru
        _
      %p428 = scmp.le.s32.totalorder 2, %s17
      // Predicated region
      $region53: #{tpu_custom_call.1} parent=5 // pred_check
        %p429 = pneg %p428
      $region54: #{tpu_custom_call.1} parent=5 // pred_check_branch
        %431 = sbr.rel (%p429) target = $region56
      $region55: #{tpu_custom_call.1} parent=5 // pred_region
        %s432 = ssub.s32 %s17, 2
        // Predicated region
        $region57: #{tpu_custom_call.1} parent=55 // pred_check
          %p433 = pneg %p114
        $region58: #{tpu_custom_call.1} parent=55 // pred_check_branch
          %435 = sbr.rel (%p433) target = $region60
        $region59: #{tpu_custom_call.1} parent=55 // pred_region
          %p436 = scmp.lt.s32.totalorder %s28, 1
          %s437 = scalar_select %p436, %s28, 1
          %s438 = smul.addr %s437, 4
          %s439 = scalar_lea.vmem %s2, %s438
        $region60: #{tpu_custom_call.1} parent=55 // pred_fallthru
          _
        // Predicated region
        $region61: #{tpu_custom_call.1} parent=55 // pred_check
          %p440 = pneg %p140
        $region62: #{tpu_custom_call.1} parent=55 // pred_check_branch
          %442 = sbr.rel (%p440) target = $region64
        $region63: #{tpu_custom_call.1} parent=55 // pred_region
          %p443 = scmp.lt.s32.totalorder %s28, 1
          %s444 = scalar_select %p443, %s28, 1
          %s445 = smul.addr %s444, 4
          %s446 = scalar_lea.vmem %s3, %s445
        $region64: #{tpu_custom_call.1} parent=55 // pred_fallthru
          _
        // Predicated region
        $region65: #{tpu_custom_call.1} parent=55 // pred_check
          %p447 = pneg %p166
        $region66: #{tpu_custom_call.1} parent=55 // pred_check_branch
          %449 = sbr.rel (%p447) target = $region68
        $region67: #{tpu_custom_call.1} parent=55 // pred_region
          %p450 = scmp.lt.s32.totalorder %s28, 1
          %s451 = scalar_select %p450, %s28, 1
          %s452 = smul.addr %s451, 4
          %s453 = scalar_lea.vmem %s4, %s452
        $region68: #{tpu_custom_call.1} parent=55 // pred_fallthru
          _
      $region56: #{tpu_custom_call.1} parent=5 // pred_fallthru
        _
    $region6: #{tpu_custom_call.1} parent=1 // loop_footer
      %s21 = sadd.s32 1, %s17
    $region7: #{tpu_custom_call.1} parent=1 // loop_footer_branch
      %16 = sbr.rel target = $region3
    $region8: #{tpu_custom_call.1} parent=1 // loop_exit
      _
    %454 = vsyncpa [#allocation3], 1
    %s455 = scalar_lea.sflag [#allocation3], 1
    %456 = vsyncpa %s455, 1
    %457 = vsyncpa [#allocation5], 1
    %s458 = scalar_lea.sflag [#allocation5], 1
    %459 = vsyncpa %s458, 1

</llo_original>
